<compile_context>
chip_gen: v5e
topology: v5e:2x2
jax: 0.10.0
libtpu: 0.0.40
codegen_flags: <defaults>
</compile_context>

<pallas_src>
import jax
import jax.numpy as jnp
from jax.experimental import pallas as pl
from jax.experimental.pallas import tpu as pltpu


def _add_kernel(x_ref, o_ref):
    x = x_ref[...]
    o_ref[...] = x + x + jnp.asarray(2, dtype=x.dtype)


_LANES = 128
# rows per block on the grid path: 8192 * 128 * 4 B = 4 MiB f32 blocks.
_BLOCK_ROWS = 8192
# below this row count run a single whole-slab block (no grid): 2 MiB in +
# 2 MiB out fits the default scoped VMEM on every generation and avoids the
# ~0.35 us/step pipeline overhead that dominates small, launch-bound inputs.
_SINGLE_BLOCK_ROWS = 4096
# 4x block bytes (double-buffered in + out = 16 MiB) plus headroom; fits
# physical VMEM on v5e/v6e (128 MiB) and v7x (64 MiB).
_GRID_VMEM_LIMIT = 48 << 20


def _grid_dimension_semantics():
    """CORE_PARALLEL on v7x (2 TensorCores/chip), plain 'parallel' elsewhere."""
    try:
        kind = jax.devices()[0].device_kind.lower()
        if "v7" in kind:
            return (getattr(pltpu, "CORE_PARALLEL", "parallel"),)
    except Exception:
        pass
    return ("parallel",)


def _add_lane_dense(x2d, rows, dtype):
    """Run the kernel on a lane-dense (rows, 128) slab."""
    if rows <= _SINGLE_BLOCK_ROWS:
        # Single full-array block, no grid machinery.
        return pl.pallas_call(
            _add_kernel,
            out_shape=jax.ShapeDtypeStruct((rows, _LANES), dtype),
        )(x2d)

    # Large input: stream 4 MiB lane-dense blocks; the ragged row tail is
    # handled by Pallas block masking (safe for a pure elementwise op).
    grid = (pl.cdiv(rows, _BLOCK_ROWS),)
    return pl.pallas_call(
        _add_kernel,
        out_shape=jax.ShapeDtypeStruct((rows, _LANES), dtype),
        grid_spec=pltpu.PrefetchScalarGridSpec(
            num_scalar_prefetch=0,
            grid=grid,
            in_specs=[pl.BlockSpec((_BLOCK_ROWS, _LANES), lambda i: (i, 0))],
            out_specs=pl.BlockSpec((_BLOCK_ROWS, _LANES), lambda i: (i, 0)),
        ),
        compiler_params=pltpu.CompilerParams(
            dimension_semantics=_grid_dimension_semantics(),
            vmem_limit_bytes=_GRID_VMEM_LIMIT,
        ),
    )(x2d)


def add_forward(x):
    """y = x + x + 2, elementwise, same shape/dtype as x."""
    orig_shape = x.shape
    dtype = x.dtype
    n = x.size

    x_flat = jnp.ravel(x)
    n_aligned = (n // _LANES) * _LANES
    rows = n_aligned // _LANES

    if n_aligned == n:
        # Common (128-aligned) case: fully lane-dense, no wrapper pad/slice.
        # (2,4,16,16) -> 2048 elements -> (16, 128) slab.
        y2d = _add_lane_dense(x_flat.reshape(rows, _LANES), rows, dtype)
        return y2d.reshape(orig_shape)

    # Ragged size: Pallas handles the 128-aligned prefix; XLA handles the
    # <128-element tail.  Avoids the old full-array pad + slice round trips.
    two = jnp.asarray(2, dtype=dtype)
    parts = []
    if rows > 0:
        y_prefix = _add_lane_dense(
            x_flat[:n_aligned].reshape(rows, _LANES), rows, dtype
        ).reshape(-1)
        parts.append(y_prefix)
    tail = x_flat[n_aligned:]
    parts.append(tail + tail + two)
    y_flat = parts[0] if len(parts) == 1 else jnp.concatenate(parts)
    return y_flat.reshape(orig_shape)


if __name__ == "__main__":
    key = jax.random.PRNGKey(0)
    x = jax.random.normal(key, (2, 4, 16, 16), dtype=jnp.float32)

    y = add_forward(x)
    jax.block_until_ready(y)

    # correctness check vs plain JAX reference
    y_ref = x + x + 2.0
    assert y.shape == x.shape and y.dtype == x.dtype
    assert jnp.allclose(y, y_ref, atol=1e-6), "mismatch vs reference"

    print("KERNEL_OK")
</pallas_src>

<mosaic_0001>
module attributes {stable_mosaic.version = 11 : i64} {
  func.func @_add_kernel(%arg0: memref<16x128xf32, #tpu.memory_space<vmem>>, %arg1: memref<16x128xf32, #tpu.memory_space<vmem>>) attributes {dimension_semantics = [], scalar_prefetch = 0 : i64, scratch_operands = 0 : i64, tpu.core_type = #tpu.core_type<tc>} {
    %c0 = arith.constant 0 : index
    %c0_0 = arith.constant 0 : index
    %0 = vector.load %arg0[%c0, %c0_0] : memref<16x128xf32, #tpu.memory_space<vmem>>, vector<16x128xf32>
    %1 = arith.addf %0, %0 : vector<16x128xf32>
    %cst = arith.constant 2.000000e+00 : f32
    %2 = vector.broadcast %cst : f32 to vector<16x128xf32>
    %3 = arith.addf %1, %2 : vector<16x128xf32>
    %c0_1 = arith.constant 0 : index
    %c0_2 = arith.constant 0 : index
    %4 = vector.load %arg1[%c0_1, %c0_2] : memref<16x128xf32, #tpu.memory_space<vmem>>, vector<16x128xf32>
    tpu.vector_store %arg1[%c0_1, %c0_2], %3 {strides = array<i32>} : memref<16x128xf32, #tpu.memory_space<vmem>>, vector<16x128xf32>,
    return
  }
}

</mosaic_0001>

<llo_original>
// kernel: tpu_custom_call.1
$region0: #{tpu_custom_call.1}
  #allocation0 [shape = 'u32[]', space=smem, size = 0x4, offset = 0x4, fixed_abs, tag = 'smem constant byte address 0x4 - core index']
  #allocation1 [shape = 'u32[72,128]{1,0:T(1,128)}', space=vmem, size = 0x9000, scoped, tag = 'internal scratch']
  %s0 = inlined_call_operand.hbm [shape: f32[16,128], index: 0, kind: input, shape index: {}]
  %s1 = inlined_call_operand.hbm [shape: f32[16,128], index: 1, kind: output, shape index: {}]
  %s2 = sld [smem:[#allocation0]]
  $region18: #{tpu_custom_call.1} parent=0
    _
  %s4 = ssub.s32 1, %s2
  %s5 = scalar_select 0, %s4, %s2
  $region1: #{tpu_custom_call.1} parent=0
    #allocation2 [shape = 'u8[8192]{0}', space=vmem, size = 0x2000, scoped, tag = 'input window, operand 0, single buffered']
    #allocation3 [shape = 's32[1]{0}', space=sflag, size = 0x4, scoped, tag = 'scoped memory for tpu_custom_call.1']
    #allocation4 [shape = 's32[1]{0}', space=sflag, size = 0x4, scoped, tag = 'scoped memory for tpu_custom_call.1']
    #allocation5 [shape = 'u8[8192]{0}', space=vmem, size = 0x2000, scoped, tag = 'output window, operand 0, single buffered']
    %6 = vsyncpa [#allocation3], 0
    %7 = vsyncpa [#allocation4], 0
    // Predicated region
    $region2: #{tpu_custom_call.1} parent=1 // pred_check
      _
    $region3: #{tpu_custom_call.1} parent=1 // pred_check_branch
      %9 = sbr.rel (0) target = $region5
    $region4: #{tpu_custom_call.1} parent=1 // pred_region
      %11 = vsyncadd [#allocation3], 0
      %s12 = sshll.u32 %s0, 4
      %s13 = int_to_ptr.hbm [resolvable:$true] %s12
      %s14 = sshll.u32 [#allocation2], 4
      %s15 = int_to_ptr.vmem [resolvable:$true] %s14
      %20 = dma.hbm_to_vmem [thread:$0]  %s13, 256, %s15, [#allocation3], 128, 128, 8
    $region5: #{tpu_custom_call.1} parent=1 // pred_fallthru
      _
    // Predicated region
    $region6: #{tpu_custom_call.1} parent=1 // pred_check
      _
    $region7: #{tpu_custom_call.1} parent=1 // pred_check_branch
      %22 = sbr.rel (0) target = $region9
    $region8: #{tpu_custom_call.1} parent=1 // pred_region
      %24 = dma.done [#allocation3], 256
    $region9: #{tpu_custom_call.1} parent=1 // pred_fallthru
      _
    %v25 = vld [vmem:[#allocation2] sm:$0xff]
    %v26 = vld [vmem:[#allocation2 + $0x8] sm:$0xff]
    %v27 = vadd.f32 %v25, %v25
    %v28 = vadd.f32 %v26, %v26
    %v29 = vadd.f32 %v27, 2.0
    %v30 = vadd.f32 %v28, 2.0
    %31 = vst [vmem:[#allocation5] sm:$0xff] %v29
    %32 = vst [vmem:[#allocation5 + $0x8] sm:$0xff] %v30
    // Predicated region
    $region10: #{tpu_custom_call.1} parent=1 // pred_check
      _
    $region11: #{tpu_custom_call.1} parent=1 // pred_check_branch
      %34 = sbr.rel (0) target = $region13
    $region12: #{tpu_custom_call.1} parent=1 // pred_region
      %36 = vsyncadd [#allocation4], 0
      %s37 = sshll.u32 [#allocation5], 4
      %s38 = int_to_ptr.vmem [resolvable:$true] %s37
      %s39 = sshll.u32 %s1, 4
      %s40 = int_to_ptr.hbm [resolvable:$true] %s39
      %45 = dma.vmem_to_hbm [thread:$0]  %s38, 256, %s40, [#allocation4], 128, 128, 8
    $region13: #{tpu_custom_call.1} parent=1 // pred_fallthru
      _
    // Predicated region
    $region14: #{tpu_custom_call.1} parent=1 // pred_check
      _
    $region15: #{tpu_custom_call.1} parent=1 // pred_check_branch
      %47 = sbr.rel (0) target = $region17
    $region16: #{tpu_custom_call.1} parent=1 // pred_region
      %49 = dma.done [#allocation4], 256
    $region17: #{tpu_custom_call.1} parent=1 // pred_fallthru
      _
    %50 = vsyncpa [#allocation3], 1
    %51 = vsyncpa [#allocation4], 1

</llo_original>
